<compile_context>
chip_gen: v6e
topology: v6e:2x2x1
jax: 0.10.0
libtpu: 0.0.40
codegen_flags: <defaults>
</compile_context>

<pallas_src>
import math
import random
import warnings
from functools import partial

import jax
import jax.numpy as jnp
from jax.experimental import pallas as pl
from jax.experimental.pallas import tpu as pltpu

# Donation may be unusable in some setups; fall back silently to a copy.
warnings.filterwarnings("ignore", message="Some donated buffers were not usable")

NUM_TRANSFORMS = 3
GAIN_FACTOR = 0.5   # deterministic "parameter" of transform 0
DC_OFFSET = 0.1     # deterministic "parameter" of transform 2

FASTPATH_BYTES = 1 << 20   # below ~1 MiB let XLA fuse the trivial affine itself


def _device_is_v7() -> bool:
    try:
        kind = jax.devices()[0].device_kind.lower()
    except Exception:
        return False
    return ("v7" in kind) or ("7x" in kind) or ("tpu7" in kind)


_IS_V7 = _device_is_v7()
# v7x has 64 MiB VMEM/TC -> smaller blocks + 32 MiB scoped limit; v5e/v6e have
# 128 MiB physical -> go bigger to amortize per-grid-step overhead.
TARGET_BLOCK_BYTES = (4 << 20) if _IS_V7 else (8 << 20)
VMEM_LIMIT_BYTES = (32 << 20) if _IS_V7 else (64 << 20)


def _cdiv(a: int, b: int) -> int:
    return -(-a // b)


def _round_up(a: int, b: int) -> int:
    return _cdiv(a, b) * b


def _someof_kernel(so_ref, x_ref, o_ref):
    """so_ref: SMEM f32[2] = (scale, offset), scalar-prefetched.
    x_ref / o_ref: VMEM (block_rows, block_cols) tile. One fused multiply-add."""
    scale = so_ref[0]
    offset = so_ref[1]
    o_ref[...] = (x_ref[...].astype(jnp.float32) * scale + offset).astype(o_ref.dtype)


def _plan(rows: int, cols: int, itemsize: int):
    """Static block-shape choice: byte-budgeted, dtype-aware, no padding needed.

    Returns (block_rows, block_cols). Partial (masked) last blocks are legal:
    the (8,128) rule constrains block_shape, not the array extents.
    """
    sub_align = max(8, 32 // itemsize)        # 8 f32, 16 bf16, 32 int8/fp8

    # Lane (last-dim) blocking: use the full dim unless a single aligned row of
    # it would blow the byte budget (very long mono waveforms).
    if cols <= 128 or cols * itemsize * sub_align <= TARGET_BLOCK_BYTES:
        block_cols = cols                     # full array dim: always legal
    else:
        block_cols = max(128, (TARGET_BLOCK_BYTES // (sub_align * itemsize)) // 128 * 128)
        block_cols = min(block_cols, (cols // 128) * 128)

    # Sublane (row) blocking: biggest aligned block under the byte budget, but
    # split >= 2 ways so a ("parallel",...) grid can shard across both v7x TCs.
    if rows <= sub_align:
        block_rows = rows                     # full array dim: always legal
    else:
        budget = max(sub_align,
                     (TARGET_BLOCK_BYTES // (block_cols * itemsize)) // sub_align * sub_align)
        half = _round_up(_cdiv(rows, 2), sub_align)
        block_rows = min(budget, half)
        block_rows = max(sub_align, min(block_rows, (rows // sub_align) * sub_align))

    return block_rows, block_cols


@partial(jax.jit, donate_argnums=(0,))
def someof_apply(samples: jax.Array, scale_offset: jax.Array) -> jax.Array:
    """y = samples * scale + offset, streamed through a tiled Pallas kernel."""
    orig_shape = samples.shape
    if samples.ndim == 1:
        rows, cols = 1, samples.shape[0]
    else:
        rows, cols = math.prod(samples.shape[:-1]), samples.shape[-1]

    itemsize = jnp.dtype(samples.dtype).itemsize
    block_rows, block_cols = _plan(rows, cols, itemsize)
    grid = (_cdiv(rows, block_rows), _cdiv(cols, block_cols))

    x2d = samples.reshape(rows, cols)         # free reshape, no pad

    out2d = pl.pallas_call(
        _someof_kernel,
        out_shape=jax.ShapeDtypeStruct((rows, cols), samples.dtype),
        grid_spec=pltpu.PrefetchScalarGridSpec(
            num_scalar_prefetch=1,
            grid=grid,
            in_specs=[pl.BlockSpec((block_rows, block_cols), lambda r, c, so: (r, c))],
            out_specs=pl.BlockSpec((block_rows, block_cols), lambda r, c, so: (r, c)),
        ),
        # arg 0 = scale_offset (scalar prefetch), arg 1 = x2d -> alias to output 0.
        input_output_aliases={1: 0},
        compiler_params=pltpu.CompilerParams(
            dimension_semantics=("parallel", "parallel"),
            vmem_limit_bytes=VMEM_LIMIT_BYTES,
        ),
        cost_estimate=pl.CostEstimate(
            flops=2 * rows * cols,
            transcendentals=0,
            bytes_accessed=2 * rows * cols * itemsize,
        ),
    )(scale_offset, x2d)

    return out2d.reshape(orig_shape)


class SomeOfPallas:
    """Mirror of torch_audiomentations SomeOf semantics (output_type='tensor')."""

    def __init__(self, num_transforms, n_total=NUM_TRANSFORMS, p: float = 1.0,
                 p_mode: str = "per_batch"):
        if p_mode != "per_batch":
            raise ValueError(f'p_mode = "{p_mode}" is not supported')
        self.p = p
        self.n_total = n_total
        self.all_transforms_indexes = list(range(n_total))
        self.transform_indexes = []
        self.are_parameters_frozen = False
        if isinstance(num_transforms, tuple):
            self.min_num_transforms = num_transforms[0]
            self.max_num_transforms = (
                num_transforms[1] if num_transforms[1] else n_total
            )
        else:
            self.min_num_transforms = self.max_num_transforms = num_transforms
        assert self.min_num_transforms >= 1
        assert self.min_num_transforms <= n_total
        assert self.max_num_transforms <= n_total

    def freeze_parameters(self):
        self.are_parameters_frozen = True

    def unfreeze_parameters(self):
        self.are_parameters_frozen = False

    def randomize_parameters(self):
        num_to_apply = random.randint(self.min_num_transforms,
                                      self.max_num_transforms)
        self.transform_indexes = sorted(
            random.sample(self.all_transforms_indexes, num_to_apply)
        )

    def _fold_affine(self):
        """Compose the selected transforms (sorted order) into scale/offset.
        Only valid because all three concrete children are affine."""
        scale, offset = 1.0, 0.0
        for i in self.transform_indexes:
            assert i in (0, 1, 2), "only the three affine children are supported"
            if i == 0:        # gain
                scale *= GAIN_FACTOR
                offset *= GAIN_FACTOR
            elif i == 1:      # polarity inversion
                scale, offset = -scale, -offset
            elif i == 2:      # DC offset
                offset += DC_OFFSET
        return scale, offset

    def __call__(self, samples: jax.Array) -> jax.Array:
        # TODO(synk): arbitrary child nn.Modules are not translatable; we fold the
        # three concrete affine waveform transforms into one (scale, offset) pair.
        if random.random() < self.p:
            if not self.are_parameters_frozen:
                self.randomize_parameters()
            scale, offset = self._fold_affine()
            nbytes = samples.size * jnp.dtype(samples.dtype).itemsize
            if nbytes < FASTPATH_BYTES:
                # Tiny batch: pallas_call dispatch overhead dominates; let XLA fuse.
                return (samples.astype(jnp.float32) * scale + offset).astype(samples.dtype)
            so = jnp.asarray([scale, offset], dtype=jnp.float32)
            return someof_apply(samples, so)
        return samples


def _reference(samples, transform_indexes):
    """Pure-JAX reference of the same transform chain (sorted index order)."""
    x = samples.astype(jnp.float32)
    for i in sorted(transform_indexes):
        if i == 0:
            x = x * GAIN_FACTOR
        elif i == 1:
            x = -x
        elif i == 2:
            x = x + DC_OFFSET
    return x.astype(samples.dtype)


if __name__ == "__main__":
    # Deterministic host-side randomness (SomeOf uses Python's `random`).
    random.seed(0)

    key = jax.random.PRNGKey(0)
    B, C, T = 2, 4, 512  # small audio batch: (batch, channels, time)
    samples = jax.random.normal(key, (B, C, T), dtype=jnp.float32)

    augment = SomeOfPallas(num_transforms=(1, 3), n_total=NUM_TRANSFORMS, p=1.0)
    augment.randomize_parameters()
    augment.freeze_parameters()
    scale, offset = augment._fold_affine()

    # Pure-JAX reference of the same sorted transform chain.
    ref = _reference(samples, augment.transform_indexes)

    # 1) Direct Pallas kernel path (someof_apply donates its input -> pass a copy).
    so = jnp.asarray([scale, offset], dtype=jnp.float32)
    out_kernel = someof_apply(samples + 0.0, so)
    out_kernel = jax.block_until_ready(out_kernel)
    assert out_kernel.shape == samples.shape and out_kernel.dtype == samples.dtype
    assert jnp.allclose(out_kernel, ref, atol=1e-6), "kernel mismatch vs reference"

    # 2) Full module path (tiny input -> jnp fast path; same semantics).
    out_module = augment(samples + 0.0)
    out_module = jax.block_until_ready(out_module)
    assert jnp.allclose(out_module, ref, atol=1e-6), "module mismatch vs reference"

    print("KERNEL_OK")
</pallas_src>

<mosaic_0001>
module attributes {stable_mosaic.version = 11 : i64} {
  func.func @_someof_kernel(%arg0: i32, %arg1: i32, %arg2: memref<2xf32, #tpu.memory_space<smem>>, %arg3: memref<8x512xf32, #tpu.memory_space<vmem>>, %arg4: memref<8x512xf32, #tpu.memory_space<vmem>>) attributes {dimension_semantics = [#tpu.dimension_semantics<parallel>, #tpu.dimension_semantics<parallel>], iteration_bounds = array<i64: 1, 1>, scalar_prefetch = 1 : i64, scratch_operands = 0 : i64, tpu.core_type = #tpu.core_type<tc>, window_params = [{transform_indices = @transform_0, window_bounds = array<i64: 8, 512>}, {transform_indices = @transform_1, window_bounds = array<i64: 8, 512>}]} {
    %c0 = arith.constant 0 : index
    %0 = memref.load %arg2[%c0] : memref<2xf32, #tpu.memory_space<smem>>
    %c1 = arith.constant 1 : index
    %1 = memref.load %arg2[%c1] : memref<2xf32, #tpu.memory_space<smem>>
    %c0_0 = arith.constant 0 : index
    %c0_1 = arith.constant 0 : index
    %2 = vector.load %arg3[%c0_0, %c0_1] : memref<8x512xf32, #tpu.memory_space<vmem>>, vector<8x512xf32>
    %3 = vector.broadcast %0 : f32 to vector<8x512xf32>
    %4 = arith.mulf %2, %3 : vector<8x512xf32>
    %5 = vector.broadcast %1 : f32 to vector<8x512xf32>
    %6 = arith.addf %4, %5 : vector<8x512xf32>
    %c0_2 = arith.constant 0 : index
    %c0_3 = arith.constant 0 : index
    %7 = vector.load %arg4[%c0_2, %c0_3] : memref<8x512xf32, #tpu.memory_space<vmem>>, vector<8x512xf32>
    tpu.vector_store %arg4[%c0_2, %c0_3], %6 {strides = array<i32>} : memref<8x512xf32, #tpu.memory_space<vmem>>, vector<8x512xf32>,
    return
  }
  func.func @transform_0(%arg0: i32, %arg1: i32, %arg2: memref<2xf32, #tpu.memory_space<smem>>) -> (i32, i32) {
    %c0_i32 = arith.constant 0 : i32
    return %arg0, %arg1 : i32, i32
  }
  func.func @transform_1(%arg0: i32, %arg1: i32, %arg2: memref<2xf32, #tpu.memory_space<smem>>) -> (i32, i32) {
    %c0_i32 = arith.constant 0 : i32
    return %arg0, %arg1 : i32, i32
  }
}

</mosaic_0001>

<llo_original>
// kernel: someof_apply.1
$region0: #{someof_apply.1}
  #allocation0 [shape = 'u32[]', space=smem, size = 0x4, offset = 0x4, fixed_abs, tag = 'smem constant byte address 0x4 - core index']
  #allocation1 [shape = 'u32[144,128]{1,0:T(1,128)}', space=vmem, size = 0x12000, scoped, tag = 'internal scratch']
  #allocation2 [shape = 's32[1]{0}', space=sflag, size = 0x4, scoped, tag = 'scoped memory for someof_apply.1']
  #allocation3 [shape = 'u8[512]{0}', space=smem, size = 0x200, scoped, tag = 'prefetched SMEM operand 0']
  %s0 = inlined_call_operand.vmem [shape: f32[2], index: 0, kind: input, shape index: {}]
  %s1 = inlined_call_operand.vmem [shape: f32[8,512], index: 1, kind: input, shape index: {}, may-alias: {1,2}]
  %s2 = inlined_call_operand.vmem [shape: f32[8,512], index: 2, kind: output, shape index: {}, may-alias: {1,2}]
  %s3 = sld [smem:[#allocation0]]
  $region14: #{someof_apply.1} parent=0
    _
  %s5 = ssub.s32 1, %s3
  %s6 = scalar_select 0, %s5, %s3
  %s7 = sshll.u32 %s0, 4
  %s8 = int_to_ptr.vmem [resolvable:$true] %s7
  %10 = dma.vmem_to_smem %s8, 16, [#allocation3], [#allocation2]
  %11 = dma.done [#allocation2], 16
  %12 = sfence
  // Predicated region
  $region2: #{someof_apply.1} parent=0 // pred_check
    _
  $region3: #{someof_apply.1} parent=0 // pred_check_branch
    %14 = sbr.rel (0) target = $region5
  $region4: #{someof_apply.1} parent=0 // pred_region
    _
  $region5: #{someof_apply.1} parent=0 // pred_fallthru
    _
  %s15 = sld [smem:[#allocation3]]
  %s16 = sld [smem:[#allocation3 + $0x1]]
  %v17 = vld [vmem:[%s1] sm:$0xff]
  %v18 = vld [vmem:[%s1 + $0x8] sm:$0xff]
  %v19 = vld [vmem:[%s1 + $0x10] sm:$0xff]
  %v20 = vld [vmem:[%s1 + $0x18] sm:$0xff]
  %v21 = vstv %s15
  %v22 = vmul.f32 %v17, %v21
  %v23 = vmul.f32 %v18, %v21
  %v24 = vmul.f32 %v19, %v21
  %v25 = vmul.f32 %v20, %v21
  %v26 = vstv %s16
  %v27 = vadd.f32 %v22, %v26
  %v28 = vadd.f32 %v23, %v26
  %v29 = vadd.f32 %v24, %v26
  %v30 = vadd.f32 %v25, %v26
  %31 = vst [vmem:[%s2] sm:$0xff] %v27
  %32 = vst [vmem:[%s2 + $0x8] sm:$0xff] %v28
  %33 = vst [vmem:[%s2 + $0x10] sm:$0xff] %v29
  %34 = vst [vmem:[%s2 + $0x18] sm:$0xff] %v30
  // Predicated region
  $region6: #{someof_apply.1} parent=0 // pred_check
    _
  $region7: #{someof_apply.1} parent=0 // pred_check_branch
    %36 = sbr.rel (0) target = $region9
  $region8: #{someof_apply.1} parent=0 // pred_region
    _
  $region9: #{someof_apply.1} parent=0 // pred_fallthru
    _
  // Predicated region
  $region10: #{someof_apply.1} parent=0 // pred_check
    _
  $region11: #{someof_apply.1} parent=0 // pred_check_branch
    %38 = sbr.rel (0) target = $region13
  $region12: #{someof_apply.1} parent=0 // pred_region
    _
  $region13: #{someof_apply.1} parent=0 // pred_fallthru
    _

</llo_original>
